<compile_context>
chip_gen: v5e
topology: v5e:2x2
jax: 0.10.0
libtpu: 0.0.40
codegen_flags: <defaults>
</compile_context>

<pallas_src>
import jax
import jax.numpy as jnp
from jax.experimental import pallas as pl
from jax.experimental.pallas import tpu as pltpu

# ----- model config (encoder_type = 'LSTMEncoder' style => seq_in_size = 4*hidden_dim)
HIDDEN_DIM = 32
FC_DIM = 64
OUT_DIM = 3            # NLI: entailment / contradiction / neutral
SEQ_IN = 4 * HIDDEN_DIM
BATCH = 2
SEQ_LEN = 8
VOCAB = 100

# ----- TPU-friendly padded sizes: sublane (batch) -> multiple of 8, lanes -> 128.
BPAD = 8               # padded batch rows
VPAD = 128             # vocab padded so the pooling matmul K dim is 128
HPAD = 128             # hidden padded to a full lane width
FCPAD = 128            # fc_dim padded to a full lane width
OPAD = 128             # out_dim padded -> unmasked, lane-dense output stores


# --------------------------------------------------------------------------
# Fused kernel: embedding mean-pool (one-hot matmul) + 3-layer classifier MLP
# --------------------------------------------------------------------------
def nli_kernel(prem_ids_ref, hypo_ids_ref, emb_ref,
               w1p_ref, w1h_ref, w1m_ref, b1_ref,
               w2_ref, b2_ref, w3_ref, b3_ref,
               out_ref):
    # TODO(synk): SentenceEmbedding source was not provided; emulated here as
    # mean-pooled token embeddings, fused into the kernel as counts/L @ emb.
    vocab_iota = jax.lax.broadcasted_iota(jnp.int32, (BPAD, VPAD), 1)
    inv_len = jnp.float32(1.0 / SEQ_LEN)

    def mean_pool(ids_ref):
        counts = jnp.zeros((BPAD, VPAD), jnp.float32)
        for t in range(SEQ_LEN):                       # static, fully unrolled
            tok = ids_ref[:, t:t + 1]                  # (BPAD, 1) int32
            counts = counts + (vocab_iota == tok).astype(jnp.float32)
        # (BPAD, VPAD) @ (VPAD, HPAD) on the MXU -> mean-pooled embeddings
        return jnp.dot(counts * inv_len, emb_ref[...],
                       preferred_element_type=jnp.float32)

    prem = mean_pool(prem_ids_ref)                     # (BPAD, HPAD)
    hypo = mean_pool(hypo_ids_ref)                     # (BPAD, HPAD)

    # cat([p, h, p-h, p*h]) @ W1  ==  p@(W1a+W1c) + h@(W1b-W1c) + (p*h)@W1d
    h1 = (jnp.dot(prem, w1p_ref[...], preferred_element_type=jnp.float32)
          + jnp.dot(hypo, w1h_ref[...], preferred_element_type=jnp.float32)
          + jnp.dot(prem * hypo, w1m_ref[...], preferred_element_type=jnp.float32)
          + b1_ref[...])
    h2 = jnp.dot(h1, w2_ref[...], preferred_element_type=jnp.float32) + b2_ref[...]
    h3 = jnp.dot(h2, w3_ref[...], preferred_element_type=jnp.float32) + b3_ref[...]
    out_ref[...] = h3.astype(out_ref.dtype)


# --------------------------------------------------------------------------
# Wrapper: trace-time weight split + zero padding, then one pallas_call
# --------------------------------------------------------------------------
def _pad2(x, rows, cols):
    return jnp.pad(x, ((0, rows - x.shape[0]), (0, cols - x.shape[1])))


def _prepare_padded_operands(emb_table, mlp_params):
    """Split W1, fold the (prem - hypo) slab, and zero-pad everything (exact)."""
    w1, b1, w2, b2, w3, b3 = mlp_params
    H = HIDDEN_DIM
    w1a, w1b, w1c, w1d = w1[:H], w1[H:2 * H], w1[2 * H:3 * H], w1[3 * H:]
    w1p = w1a + w1c          # multiplies prem
    w1h = w1b - w1c          # multiplies hypo
    w1m = w1d                # multiplies prem * hypo
    return (
        _pad2(emb_table, VPAD, HPAD),
        _pad2(w1p, HPAD, FCPAD), _pad2(w1h, HPAD, FCPAD), _pad2(w1m, HPAD, FCPAD),
        _pad2(b1, 1, FCPAD),
        _pad2(w2, FCPAD, FCPAD), _pad2(b2, 1, FCPAD),
        _pad2(w3, FCPAD, OPAD), _pad2(b3, 1, OPAD),
    )


@jax.jit
def nli_model_forward(premise_ids, hypothesis_ids, emb_table, mlp_params):
    b = premise_ids.shape[0]
    assert b <= BPAD
    pids = jnp.zeros((BPAD, SEQ_LEN), jnp.int32).at[:b].set(premise_ids.astype(jnp.int32))
    hids = jnp.zeros((BPAD, SEQ_LEN), jnp.int32).at[:b].set(hypothesis_ids.astype(jnp.int32))
    operands = _prepare_padded_operands(emb_table, mlp_params)

    flops = (2 * BPAD * VPAD * HPAD * 2          # two pooling matmuls
             + 2 * BPAD * HPAD * FCPAD * 3       # split first layer
             + 2 * BPAD * FCPAD * FCPAD          # second layer
             + 2 * BPAD * FCPAD * OPAD)          # third layer
    bytes_accessed = (2 * BPAD * SEQ_LEN * 4
                      + sum(int(x.size) * 4 for x in operands)
                      + BPAD * OPAD * 4)

    vmem = pl.BlockSpec(memory_space=pltpu.MemorySpace.VMEM)
    out_pad = pl.pallas_call(
        nli_kernel,
        out_shape=jax.ShapeDtypeStruct((BPAD, OPAD), jnp.float32),
        in_specs=[vmem] * (2 + len(operands)),
        out_specs=vmem,
        cost_estimate=pl.CostEstimate(flops=flops, transcendentals=0,
                                      bytes_accessed=bytes_accessed),
    )(pids, hids, *operands)
    return out_pad[:b, :OUT_DIM]


# --------------------------------------------------------------------------
# Parameter init (matches PyTorch nn.Linear default init; W stored as (in, out))
# --------------------------------------------------------------------------
def init_linear(key, fan_in, fan_out):
    kw, kb = jax.random.split(key)
    bound = 1.0 / (fan_in ** 0.5)
    w = jax.random.uniform(kw, (fan_in, fan_out), jnp.float32, -bound, bound)
    b = jax.random.uniform(kb, (1, fan_out), jnp.float32, -bound, bound)
    return w, b


# --------------------------------------------------------------------------
if __name__ == "__main__":
    root = jax.random.PRNGKey(0)
    k_emb, k1, k2, k3, k_p, k_h = jax.random.split(root, 6)

    emb_table = jax.random.normal(k_emb, (VOCAB, HIDDEN_DIM), jnp.float32) * 0.1

    w1, b1 = init_linear(k1, SEQ_IN, FC_DIM)
    w2, b2 = init_linear(k2, FC_DIM, FC_DIM)
    w3, b3 = init_linear(k3, FC_DIM, OUT_DIM)
    mlp_params = (w1, b1, w2, b2, w3, b3)

    premise_ids = jax.random.randint(k_p, (BATCH, SEQ_LEN), 0, VOCAB)
    hypothesis_ids = jax.random.randint(k_h, (BATCH, SEQ_LEN), 0, VOCAB)

    out = nli_model_forward(premise_ids, hypothesis_ids, emb_table, mlp_params)
    out = jax.block_until_ready(out)

    # pure-JAX reference (original concat formulation, unpadded shapes)
    prem = jnp.mean(emb_table[premise_ids], axis=1)
    hypo = jnp.mean(emb_table[hypothesis_ids], axis=1)
    feats = jnp.concatenate([prem, hypo, prem - hypo, prem * hypo], axis=1)
    ref = ((feats @ w1 + b1) @ w2 + b2) @ w3 + b3

    assert out.shape == (BATCH, OUT_DIM)
    assert jnp.allclose(out, ref, atol=1e-4, rtol=1e-4), \
        f"max abs err = {float(jnp.max(jnp.abs(out - ref)))}"

    print("KERNEL_OK")
</pallas_src>

<mosaic_0001>
module attributes {stable_mosaic.version = 11 : i64} {
  func.func @nli_kernel(%arg0: memref<8x8xi32, #tpu.memory_space<vmem>>, %arg1: memref<8x8xi32, #tpu.memory_space<vmem>>, %arg2: memref<128x128xf32, #tpu.memory_space<vmem>>, %arg3: memref<128x128xf32, #tpu.memory_space<vmem>>, %arg4: memref<128x128xf32, #tpu.memory_space<vmem>>, %arg5: memref<128x128xf32, #tpu.memory_space<vmem>>, %arg6: memref<1x128xf32, #tpu.memory_space<vmem>>, %arg7: memref<128x128xf32, #tpu.memory_space<vmem>>, %arg8: memref<1x128xf32, #tpu.memory_space<vmem>>, %arg9: memref<128x128xf32, #tpu.memory_space<vmem>>, %arg10: memref<1x128xf32, #tpu.memory_space<vmem>>, %arg11: memref<8x128xf32, #tpu.memory_space<vmem>>) attributes {dimension_semantics = [], scalar_prefetch = 0 : i64, scratch_operands = 0 : i64, tpu.core_type = #tpu.core_type<tc>} {
    %0 = tpu.iota {dimensions = array<i32: 1>} : vector<8x128xi32>
    %cst = arith.constant 0.000000e+00 : f32
    %1 = vector.broadcast %cst : f32 to vector<8x128xf32>
    %c0 = arith.constant 0 : index
    %c0_0 = arith.constant 0 : index
    %2 = vector.load %arg0[%c0, %c0_0] : memref<8x8xi32, #tpu.memory_space<vmem>>, vector<8x1xi32>
    %3 = vector.broadcast %2 : vector<8x1xi32> to vector<8x128xi32>
    %4 = arith.cmpi eq, %0, %3 : vector<8x128xi32>
    %5 = arith.extui %4 : vector<8x128xi1> to vector<8x128xi32>
    %6 = arith.sitofp %5 : vector<8x128xi32> to vector<8x128xf32>
    %7 = arith.addf %1, %6 : vector<8x128xf32>
    %c0_1 = arith.constant 0 : index
    %c1 = arith.constant 1 : index
    %8 = vector.load %arg0[%c0_1, %c1] : memref<8x8xi32, #tpu.memory_space<vmem>>, vector<8x1xi32>
    %9 = vector.broadcast %8 : vector<8x1xi32> to vector<8x128xi32>
    %10 = arith.cmpi eq, %0, %9 : vector<8x128xi32>
    %11 = arith.extui %10 : vector<8x128xi1> to vector<8x128xi32>
    %12 = arith.sitofp %11 : vector<8x128xi32> to vector<8x128xf32>
    %13 = arith.addf %7, %12 : vector<8x128xf32>
    %c0_2 = arith.constant 0 : index
    %c2 = arith.constant 2 : index
    %14 = vector.load %arg0[%c0_2, %c2] : memref<8x8xi32, #tpu.memory_space<vmem>>, vector<8x1xi32>
    %15 = vector.broadcast %14 : vector<8x1xi32> to vector<8x128xi32>
    %16 = arith.cmpi eq, %0, %15 : vector<8x128xi32>
    %17 = arith.extui %16 : vector<8x128xi1> to vector<8x128xi32>
    %18 = arith.sitofp %17 : vector<8x128xi32> to vector<8x128xf32>
    %19 = arith.addf %13, %18 : vector<8x128xf32>
    %c0_3 = arith.constant 0 : index
    %c3 = arith.constant 3 : index
    %20 = vector.load %arg0[%c0_3, %c3] : memref<8x8xi32, #tpu.memory_space<vmem>>, vector<8x1xi32>
    %21 = vector.broadcast %20 : vector<8x1xi32> to vector<8x128xi32>
    %22 = arith.cmpi eq, %0, %21 : vector<8x128xi32>
    %23 = arith.extui %22 : vector<8x128xi1> to vector<8x128xi32>
    %24 = arith.sitofp %23 : vector<8x128xi32> to vector<8x128xf32>
    %25 = arith.addf %19, %24 : vector<8x128xf32>
    %c0_4 = arith.constant 0 : index
    %c4 = arith.constant 4 : index
    %26 = vector.load %arg0[%c0_4, %c4] : memref<8x8xi32, #tpu.memory_space<vmem>>, vector<8x1xi32>
    %27 = vector.broadcast %26 : vector<8x1xi32> to vector<8x128xi32>
    %28 = arith.cmpi eq, %0, %27 : vector<8x128xi32>
    %29 = arith.extui %28 : vector<8x128xi1> to vector<8x128xi32>
    %30 = arith.sitofp %29 : vector<8x128xi32> to vector<8x128xf32>
    %31 = arith.addf %25, %30 : vector<8x128xf32>
    %c0_5 = arith.constant 0 : index
    %c5 = arith.constant 5 : index
    %32 = vector.load %arg0[%c0_5, %c5] : memref<8x8xi32, #tpu.memory_space<vmem>>, vector<8x1xi32>
    %33 = vector.broadcast %32 : vector<8x1xi32> to vector<8x128xi32>
    %34 = arith.cmpi eq, %0, %33 : vector<8x128xi32>
    %35 = arith.extui %34 : vector<8x128xi1> to vector<8x128xi32>
    %36 = arith.sitofp %35 : vector<8x128xi32> to vector<8x128xf32>
    %37 = arith.addf %31, %36 : vector<8x128xf32>
    %c0_6 = arith.constant 0 : index
    %c6 = arith.constant 6 : index
    %38 = vector.load %arg0[%c0_6, %c6] : memref<8x8xi32, #tpu.memory_space<vmem>>, vector<8x1xi32>
    %39 = vector.broadcast %38 : vector<8x1xi32> to vector<8x128xi32>
    %40 = arith.cmpi eq, %0, %39 : vector<8x128xi32>
    %41 = arith.extui %40 : vector<8x128xi1> to vector<8x128xi32>
    %42 = arith.sitofp %41 : vector<8x128xi32> to vector<8x128xf32>
    %43 = arith.addf %37, %42 : vector<8x128xf32>
    %c0_7 = arith.constant 0 : index
    %c7 = arith.constant 7 : index
    %44 = vector.load %arg0[%c0_7, %c7] : memref<8x8xi32, #tpu.memory_space<vmem>>, vector<8x1xi32>
    %45 = vector.broadcast %44 : vector<8x1xi32> to vector<8x128xi32>
    %46 = arith.cmpi eq, %0, %45 : vector<8x128xi32>
    %47 = arith.extui %46 : vector<8x128xi1> to vector<8x128xi32>
    %48 = arith.sitofp %47 : vector<8x128xi32> to vector<8x128xf32>
    %49 = arith.addf %43, %48 : vector<8x128xf32>
    %cst_8 = arith.constant 1.250000e-01 : f32
    %50 = vector.broadcast %cst_8 : f32 to vector<8x128xf32>
    %51 = arith.mulf %49, %50 : vector<8x128xf32>
    %c0_9 = arith.constant 0 : index
    %c0_10 = arith.constant 0 : index
    %52 = vector.load %arg2[%c0_9, %c0_10] : memref<128x128xf32, #tpu.memory_space<vmem>>, vector<128x128xf32>
    %cst_11 = arith.constant dense<0.000000e+00> : vector<8x128xf32>
    %53 = tpu.matmul %51, %52, %cst_11 {dimension_numbers = #tpu.dot_dimension_numbers<[1], [0], [0], [1], [0, 0, 1, 1], [], []>} : vector<8x128xf32>, vector<128x128xf32>, vector<8x128xf32> -> vector<8x128xf32>
    %cst_12 = arith.constant 0.000000e+00 : f32
    %54 = vector.broadcast %cst_12 : f32 to vector<8x128xf32>
    %c0_13 = arith.constant 0 : index
    %c0_14 = arith.constant 0 : index
    %55 = vector.load %arg1[%c0_13, %c0_14] : memref<8x8xi32, #tpu.memory_space<vmem>>, vector<8x1xi32>
    %56 = vector.broadcast %55 : vector<8x1xi32> to vector<8x128xi32>
    %57 = arith.cmpi eq, %0, %56 : vector<8x128xi32>
    %58 = arith.extui %57 : vector<8x128xi1> to vector<8x128xi32>
    %59 = arith.sitofp %58 : vector<8x128xi32> to vector<8x128xf32>
    %60 = arith.addf %54, %59 : vector<8x128xf32>
    %c0_15 = arith.constant 0 : index
    %c1_16 = arith.constant 1 : index
    %61 = vector.load %arg1[%c0_15, %c1_16] : memref<8x8xi32, #tpu.memory_space<vmem>>, vector<8x1xi32>
    %62 = vector.broadcast %61 : vector<8x1xi32> to vector<8x128xi32>
    %63 = arith.cmpi eq, %0, %62 : vector<8x128xi32>
    %64 = arith.extui %63 : vector<8x128xi1> to vector<8x128xi32>
    %65 = arith.sitofp %64 : vector<8x128xi32> to vector<8x128xf32>
    %66 = arith.addf %60, %65 : vector<8x128xf32>
    %c0_17 = arith.constant 0 : index
    %c2_18 = arith.constant 2 : index
    %67 = vector.load %arg1[%c0_17, %c2_18] : memref<8x8xi32, #tpu.memory_space<vmem>>, vector<8x1xi32>
    %68 = vector.broadcast %67 : vector<8x1xi32> to vector<8x128xi32>
    %69 = arith.cmpi eq, %0, %68 : vector<8x128xi32>
    %70 = arith.extui %69 : vector<8x128xi1> to vector<8x128xi32>
    %71 = arith.sitofp %70 : vector<8x128xi32> to vector<8x128xf32>
    %72 = arith.addf %66, %71 : vector<8x128xf32>
    %c0_19 = arith.constant 0 : index
    %c3_20 = arith.constant 3 : index
    %73 = vector.load %arg1[%c0_19, %c3_20] : memref<8x8xi32, #tpu.memory_space<vmem>>, vector<8x1xi32>
    %74 = vector.broadcast %73 : vector<8x1xi32> to vector<8x128xi32>
    %75 = arith.cmpi eq, %0, %74 : vector<8x128xi32>
    %76 = arith.extui %75 : vector<8x128xi1> to vector<8x128xi32>
    %77 = arith.sitofp %76 : vector<8x128xi32> to vector<8x128xf32>
    %78 = arith.addf %72, %77 : vector<8x128xf32>
    %c0_21 = arith.constant 0 : index
    %c4_22 = arith.constant 4 : index
    %79 = vector.load %arg1[%c0_21, %c4_22] : memref<8x8xi32, #tpu.memory_space<vmem>>, vector<8x1xi32>
    %80 = vector.broadcast %79 : vector<8x1xi32> to vector<8x128xi32>
    %81 = arith.cmpi eq, %0, %80 : vector<8x128xi32>
    %82 = arith.extui %81 : vector<8x128xi1> to vector<8x128xi32>
    %83 = arith.sitofp %82 : vector<8x128xi32> to vector<8x128xf32>
    %84 = arith.addf %78, %83 : vector<8x128xf32>
    %c0_23 = arith.constant 0 : index
    %c5_24 = arith.constant 5 : index
    %85 = vector.load %arg1[%c0_23, %c5_24] : memref<8x8xi32, #tpu.memory_space<vmem>>, vector<8x1xi32>
    %86 = vector.broadcast %85 : vector<8x1xi32> to vector<8x128xi32>
    %87 = arith.cmpi eq, %0, %86 : vector<8x128xi32>
    %88 = arith.extui %87 : vector<8x128xi1> to vector<8x128xi32>
    %89 = arith.sitofp %88 : vector<8x128xi32> to vector<8x128xf32>
    %90 = arith.addf %84, %89 : vector<8x128xf32>
    %c0_25 = arith.constant 0 : index
    %c6_26 = arith.constant 6 : index
    %91 = vector.load %arg1[%c0_25, %c6_26] : memref<8x8xi32, #tpu.memory_space<vmem>>, vector<8x1xi32>
    %92 = vector.broadcast %91 : vector<8x1xi32> to vector<8x128xi32>
    %93 = arith.cmpi eq, %0, %92 : vector<8x128xi32>
    %94 = arith.extui %93 : vector<8x128xi1> to vector<8x128xi32>
    %95 = arith.sitofp %94 : vector<8x128xi32> to vector<8x128xf32>
    %96 = arith.addf %90, %95 : vector<8x128xf32>
    %c0_27 = arith.constant 0 : index
    %c7_28 = arith.constant 7 : index
    %97 = vector.load %arg1[%c0_27, %c7_28] : memref<8x8xi32, #tpu.memory_space<vmem>>, vector<8x1xi32>
    %98 = vector.broadcast %97 : vector<8x1xi32> to vector<8x128xi32>
    %99 = arith.cmpi eq, %0, %98 : vector<8x128xi32>
    %100 = arith.extui %99 : vector<8x128xi1> to vector<8x128xi32>
    %101 = arith.sitofp %100 : vector<8x128xi32> to vector<8x128xf32>
    %102 = arith.addf %96, %101 : vector<8x128xf32>
    %cst_29 = arith.constant 1.250000e-01 : f32
    %103 = vector.broadcast %cst_29 : f32 to vector<8x128xf32>
    %104 = arith.mulf %102, %103 : vector<8x128xf32>
    %c0_30 = arith.constant 0 : index
    %c0_31 = arith.constant 0 : index
    %105 = vector.load %arg2[%c0_30, %c0_31] : memref<128x128xf32, #tpu.memory_space<vmem>>, vector<128x128xf32>
    %cst_32 = arith.constant dense<0.000000e+00> : vector<8x128xf32>
    %106 = tpu.matmul %104, %105, %cst_32 {dimension_numbers = #tpu.dot_dimension_numbers<[1], [0], [0], [1], [0, 0, 1, 1], [], []>} : vector<8x128xf32>, vector<128x128xf32>, vector<8x128xf32> -> vector<8x128xf32>
    %c0_33 = arith.constant 0 : index
    %c0_34 = arith.constant 0 : index
    %107 = vector.load %arg3[%c0_33, %c0_34] : memref<128x128xf32, #tpu.memory_space<vmem>>, vector<128x128xf32>
    %cst_35 = arith.constant dense<0.000000e+00> : vector<8x128xf32>
    %108 = tpu.matmul %53, %107, %cst_35 {dimension_numbers = #tpu.dot_dimension_numbers<[1], [0], [0], [1], [0, 0, 1, 1], [], []>} : vector<8x128xf32>, vector<128x128xf32>, vector<8x128xf32> -> vector<8x128xf32>
    %c0_36 = arith.constant 0 : index
    %c0_37 = arith.constant 0 : index
    %109 = vector.load %arg4[%c0_36, %c0_37] : memref<128x128xf32, #tpu.memory_space<vmem>>, vector<128x128xf32>
    %cst_38 = arith.constant dense<0.000000e+00> : vector<8x128xf32>
    %110 = tpu.matmul %106, %109, %cst_38 {dimension_numbers = #tpu.dot_dimension_numbers<[1], [0], [0], [1], [0, 0, 1, 1], [], []>} : vector<8x128xf32>, vector<128x128xf32>, vector<8x128xf32> -> vector<8x128xf32>
    %111 = arith.addf %108, %110 : vector<8x128xf32>
    %112 = arith.mulf %53, %106 : vector<8x128xf32>
    %c0_39 = arith.constant 0 : index
    %c0_40 = arith.constant 0 : index
    %113 = vector.load %arg5[%c0_39, %c0_40] : memref<128x128xf32, #tpu.memory_space<vmem>>, vector<128x128xf32>
    %cst_41 = arith.constant dense<0.000000e+00> : vector<8x128xf32>
    %114 = tpu.matmul %112, %113, %cst_41 {dimension_numbers = #tpu.dot_dimension_numbers<[1], [0], [0], [1], [0, 0, 1, 1], [], []>} : vector<8x128xf32>, vector<128x128xf32>, vector<8x128xf32> -> vector<8x128xf32>
    %115 = arith.addf %111, %114 : vector<8x128xf32>
    %c0_42 = arith.constant 0 : index
    %c0_43 = arith.constant 0 : index
    %116 = vector.load %arg6[%c0_42, %c0_43] : memref<1x128xf32, #tpu.memory_space<vmem>>, vector<1x128xf32>
    %117 = vector.broadcast %116 : vector<1x128xf32> to vector<8x128xf32>
    %118 = arith.addf %115, %117 : vector<8x128xf32>
    %c0_44 = arith.constant 0 : index
    %c0_45 = arith.constant 0 : index
    %119 = vector.load %arg7[%c0_44, %c0_45] : memref<128x128xf32, #tpu.memory_space<vmem>>, vector<128x128xf32>
    %cst_46 = arith.constant dense<0.000000e+00> : vector<8x128xf32>
    %120 = tpu.matmul %118, %119, %cst_46 {dimension_numbers = #tpu.dot_dimension_numbers<[1], [0], [0], [1], [0, 0, 1, 1], [], []>} : vector<8x128xf32>, vector<128x128xf32>, vector<8x128xf32> -> vector<8x128xf32>
    %c0_47 = arith.constant 0 : index
    %c0_48 = arith.constant 0 : index
    %121 = vector.load %arg8[%c0_47, %c0_48] : memref<1x128xf32, #tpu.memory_space<vmem>>, vector<1x128xf32>
    %122 = vector.broadcast %121 : vector<1x128xf32> to vector<8x128xf32>
    %123 = arith.addf %120, %122 : vector<8x128xf32>
    %c0_49 = arith.constant 0 : index
    %c0_50 = arith.constant 0 : index
    %124 = vector.load %arg9[%c0_49, %c0_50] : memref<128x128xf32, #tpu.memory_space<vmem>>, vector<128x128xf32>
    %cst_51 = arith.constant dense<0.000000e+00> : vector<8x128xf32>
    %125 = tpu.matmul %123, %124, %cst_51 {dimension_numbers = #tpu.dot_dimension_numbers<[1], [0], [0], [1], [0, 0, 1, 1], [], []>} : vector<8x128xf32>, vector<128x128xf32>, vector<8x128xf32> -> vector<8x128xf32>
    %c0_52 = arith.constant 0 : index
    %c0_53 = arith.constant 0 : index
    %126 = vector.load %arg10[%c0_52, %c0_53] : memref<1x128xf32, #tpu.memory_space<vmem>>, vector<1x128xf32>
    %127 = vector.broadcast %126 : vector<1x128xf32> to vector<8x128xf32>
    %128 = arith.addf %125, %127 : vector<8x128xf32>
    %c0_54 = arith.constant 0 : index
    %c0_55 = arith.constant 0 : index
    %129 = vector.load %arg11[%c0_54, %c0_55] : memref<8x128xf32, #tpu.memory_space<vmem>>, vector<8x128xf32>
    tpu.vector_store %arg11[%c0_54, %c0_55], %128 {strides = array<i32>} : memref<8x128xf32, #tpu.memory_space<vmem>>, vector<8x128xf32>,
    return
  }
}

</mosaic_0001>

<llo_original>
// kernel: nli_model_forward.1
$region0: #{nli_model_forward.1}
  #allocation0 [shape = 'u32[]', space=smem, size = 0x4, offset = 0x4, fixed_abs, tag = 'smem constant byte address 0x4 - core index']
  #allocation1 [shape = 'u32[72,128]{1,0:T(1,128)}', space=vmem, size = 0x9000, scoped, tag = 'internal scratch']
  %s0 = inlined_call_operand.vmem [shape: s32[8,8], index: 0, kind: input, shape index: {}]
  %s1 = inlined_call_operand.vmem [shape: s32[8,8], index: 1, kind: input, shape index: {}]
  %s2 = inlined_call_operand.vmem [shape: f32[128,128], index: 2, kind: input, shape index: {}]
  %s3 = inlined_call_operand.vmem [shape: f32[128,128], index: 3, kind: input, shape index: {}]
  %s4 = inlined_call_operand.vmem [shape: f32[128,128], index: 4, kind: input, shape index: {}]
  %s5 = inlined_call_operand.vmem [shape: f32[128,128], index: 5, kind: input, shape index: {}]
  %s6 = inlined_call_operand.vmem [shape: f32[1,128], index: 6, kind: input, shape index: {}]
  %s7 = inlined_call_operand.vmem [shape: f32[128,128], index: 7, kind: input, shape index: {}]
  %s8 = inlined_call_operand.vmem [shape: f32[1,128], index: 8, kind: input, shape index: {}]
  %s9 = inlined_call_operand.vmem [shape: f32[128,128], index: 9, kind: input, shape index: {}]
  %s10 = inlined_call_operand.vmem [shape: f32[1,128], index: 10, kind: input, shape index: {}]
  %s11 = inlined_call_operand.vmem [shape: f32[8,128], index: 11, kind: output, shape index: {}]
  %s12 = sld [smem:[#allocation0]]
  $region54: #{nli_model_forward.1} parent=0
    _
  %s14 = ssub.s32 1, %s12
  %s15 = scalar_select 0, %s14, %s12
  // Predicated region
  $region2: #{nli_model_forward.1} parent=0 // pred_check
    _
  $region3: #{nli_model_forward.1} parent=0 // pred_check_branch
    %17 = sbr.rel (0) target = $region5
  $region4: #{nli_model_forward.1} parent=0 // pred_region
    _
  $region5: #{nli_model_forward.1} parent=0 // pred_fallthru
    _
  // Predicated region
  $region6: #{nli_model_forward.1} parent=0 // pred_check
    _
  $region7: #{nli_model_forward.1} parent=0 // pred_check_branch
    %19 = sbr.rel (0) target = $region9
  $region8: #{nli_model_forward.1} parent=0 // pred_region
    _
  $region9: #{nli_model_forward.1} parent=0 // pred_fallthru
    _
  // Predicated region
  $region10: #{nli_model_forward.1} parent=0 // pred_check
    _
  $region11: #{nli_model_forward.1} parent=0 // pred_check_branch
    %21 = sbr.rel (0) target = $region13
  $region12: #{nli_model_forward.1} parent=0 // pred_region
    _
  $region13: #{nli_model_forward.1} parent=0 // pred_fallthru
    _
  // Predicated region
  $region14: #{nli_model_forward.1} parent=0 // pred_check
    _
  $region15: #{nli_model_forward.1} parent=0 // pred_check_branch
    %23 = sbr.rel (0) target = $region17
  $region16: #{nli_model_forward.1} parent=0 // pred_region
    _
  $region17: #{nli_model_forward.1} parent=0 // pred_fallthru
    _
  // Predicated region
  $region18: #{nli_model_forward.1} parent=0 // pred_check
    _
  $region19: #{nli_model_forward.1} parent=0 // pred_check_branch
    %25 = sbr.rel (0) target = $region21
  $region20: #{nli_model_forward.1} parent=0 // pred_region
    _
  $region21: #{nli_model_forward.1} parent=0 // pred_fallthru
    _
  // Predicated region
  $region22: #{nli_model_forward.1} parent=0 // pred_check
    _
  $region23: #{nli_model_forward.1} parent=0 // pred_check_branch
    %27 = sbr.rel (0) target = $region25
  $region24: #{nli_model_forward.1} parent=0 // pred_region
    _
  $region25: #{nli_model_forward.1} parent=0 // pred_fallthru
    _
  // Predicated region
  $region26: #{nli_model_forward.1} parent=0 // pred_check
    _
  $region27: #{nli_model_forward.1} parent=0 // pred_check_branch
    %29 = sbr.rel (0) target = $region29
  $region28: #{nli_model_forward.1} parent=0 // pred_region
    _
  $region29: #{nli_model_forward.1} parent=0 // pred_fallthru
    _
  // Predicated region
  $region30: #{nli_model_forward.1} parent=0 // pred_check
    _
  $region31: #{nli_model_forward.1} parent=0 // pred_check_branch
    %31 = sbr.rel (0) target = $region33
  $region32: #{nli_model_forward.1} parent=0 // pred_region
    _
  $region33: #{nli_model_forward.1} parent=0 // pred_fallthru
    _
  // Predicated region
  $region34: #{nli_model_forward.1} parent=0 // pred_check
    _
  $region35: #{nli_model_forward.1} parent=0 // pred_check_branch
    %33 = sbr.rel (0) target = $region37
  $region36: #{nli_model_forward.1} parent=0 // pred_region
    _
  $region37: #{nli_model_forward.1} parent=0 // pred_fallthru
    _
  // Predicated region
  $region38: #{nli_model_forward.1} parent=0 // pred_check
    _
  $region39: #{nli_model_forward.1} parent=0 // pred_check_branch
    %35 = sbr.rel (0) target = $region41
  $region40: #{nli_model_forward.1} parent=0 // pred_region
    _
  $region41: #{nli_model_forward.1} parent=0 // pred_fallthru
    _
  // Predicated region
  $region42: #{nli_model_forward.1} parent=0 // pred_check
    _
  $region43: #{nli_model_forward.1} parent=0 // pred_check_branch
    %37 = sbr.rel (0) target = $region45
  $region44: #{nli_model_forward.1} parent=0 // pred_region
    _
  $region45: #{nli_model_forward.1} parent=0 // pred_fallthru
    _
  %v38 = vlaneseq
  %v39 = vand.u32 %v38, 127
  %v40 = vld [vmem:[%s0] sm:$0xff]
  %41 = vset.pattern.permute.xlu0 0
  %42 = vperm.xlu0 %41, %v40
  %v43 = vpop.permute.xlu0 %42
  %vm44 = vcmp.eq.s32.totalorder %v39, %v43
  %v45 = vsel %vm44, 1, 0
  %v46 = vcvt.s32.f32 %v45
  %v47 = vadd.f32 %v46, 0.0
  %48 = vset.pattern.permute.xlu0 1
  %49 = vperm.xlu0 %48, %v40
  %v50 = vpop.permute.xlu0 %49
  %vm51 = vcmp.eq.s32.totalorder %v39, %v50
  %v52 = vsel %vm51, 1, 0
  %v53 = vcvt.s32.f32 %v52
  %v54 = vadd.f32 %v47, %v53
  %55 = vset.pattern.permute.xlu0 2
  %56 = vperm.xlu0 %55, %v40
  %v57 = vpop.permute.xlu0 %56
  %vm58 = vcmp.eq.s32.totalorder %v39, %v57
  %v59 = vsel %vm58, 1, 0
  %v60 = vcvt.s32.f32 %v59
  %v61 = vadd.f32 %v54, %v60
  %62 = vset.pattern.permute.xlu0 3
  %63 = vperm.xlu0 %62, %v40
  %v64 = vpop.permute.xlu0 %63
  %vm65 = vcmp.eq.s32.totalorder %v39, %v64
  %v66 = vsel %vm65, 1, 0
  %v67 = vcvt.s32.f32 %v66
  %v68 = vadd.f32 %v61, %v67
  %69 = vset.pattern.permute.xlu0 4
  %70 = vperm.xlu0 %69, %v40
  %v71 = vpop.permute.xlu0 %70
  %vm72 = vcmp.eq.s32.totalorder %v39, %v71
  %v73 = vsel %vm72, 1, 0
  %v74 = vcvt.s32.f32 %v73
  %v75 = vadd.f32 %v68, %v74
  %76 = vset.pattern.permute.xlu0 5
  %77 = vperm.xlu0 %76, %v40
  %v78 = vpop.permute.xlu0 %77
  %vm79 = vcmp.eq.s32.totalorder %v39, %v78
  %v80 = vsel %vm79, 1, 0
  %v81 = vcvt.s32.f32 %v80
  %v82 = vadd.f32 %v75, %v81
  %83 = vset.pattern.permute.xlu0 6
  %84 = vperm.xlu0 %83, %v40
  %v85 = vpop.permute.xlu0 %84
  %vm86 = vcmp.eq.s32.totalorder %v39, %v85
  %v87 = vsel %vm86, 1, 0
  %v88 = vcvt.s32.f32 %v87
  %v89 = vadd.f32 %v82, %v88
  %90 = vset.pattern.permute.xlu0 7
  %91 = vperm.xlu0 %90, %v40
  %v92 = vpop.permute.xlu0 %91
  %vm93 = vcmp.eq.s32.totalorder %v39, %v92
  %v94 = vsel %vm93, 1, 0
  %v95 = vcvt.s32.f32 %v94
  %v96 = vadd.f32 %v89, %v95
  %v97 = vmul.f32 %v96, 0.125
  %v98 = vld [vmem:[%s2] sm:$0xff]
  %v99 = vld [vmem:[%s2 + $0x8] sm:$0xff]
  %v100 = vld [vmem:[%s2 + $0x10] sm:$0xff]
  %v101 = vld [vmem:[%s2 + $0x18] sm:$0xff]
  %v102 = vld [vmem:[%s2 + $0x20] sm:$0xff]
  %v103 = vld [vmem:[%s2 + $0x28] sm:$0xff]
  %v104 = vld [vmem:[%s2 + $0x30] sm:$0xff]
  %v105 = vld [vmem:[%s2 + $0x38] sm:$0xff]
  %v106 = vld [vmem:[%s2 + $0x40] sm:$0xff]
  %v107 = vld [vmem:[%s2 + $0x48] sm:$0xff]
  %v108 = vld [vmem:[%s2 + $0x50] sm:$0xff]
  %v109 = vld [vmem:[%s2 + $0x58] sm:$0xff]
  %v110 = vld [vmem:[%s2 + $0x60] sm:$0xff]
  %v111 = vld [vmem:[%s2 + $0x68] sm:$0xff]
  %v112 = vld [vmem:[%s2 + $0x70] sm:$0xff]
  %v113 = vld [vmem:[%s2 + $0x78] sm:$0xff]
  %114 = vmatpush.msra.mxu0 %v113
  %115 = vmatpush.msra.mxu0 %v112
  %116 = vmatpush.msra.mxu0 %v111
  %117 = vmatpush.msra.mxu0 %v110
  %118 = vmatpush.msra.mxu0 %v109
  %119 = vmatpush.msra.mxu0 %v108
  %120 = vmatpush.msra.mxu0 %v107
  %121 = vmatpush.msra.mxu0 %v106
  %122 = vmatpush.msra.mxu0 %v105
  %123 = vmatpush.msra.mxu0 %v104
  %124 = vmatpush.msra.mxu0 %v103
  %125 = vmatpush.msra.mxu0 %v102
  %126 = vmatpush.msra.mxu0 %v101
  %127 = vmatpush.msra.mxu0 %v100
  %128 = vmatpush.msra.mxu0 %v99
  %129 = vmatpush.msra.mxu0 %v98
  %130 = vmatmul.f32.gmra.mxu0 %v97
  %v131 = vpop.f32.mrf.mxu0
  %v132 = vadd.f32 0.0, %v131
  %133 = vdwg.mxu0
  %v134 = vld [vmem:[%s1] sm:$0xff]
  %135 = vset.pattern.permute.xlu0 0
  %136 = vperm.xlu0 %135, %v134
  %v137 = vpop.permute.xlu0 %136
  %vm138 = vcmp.eq.s32.totalorder %v39, %v137
  %v139 = vsel %vm138, 1, 0
  %v140 = vcvt.s32.f32 %v139
  %v141 = vadd.f32 %v140, 0.0
  %142 = vset.pattern.permute.xlu0 1
  %143 = vperm.xlu0 %142, %v134
  %v144 = vpop.permute.xlu0 %143
  %vm145 = vcmp.eq.s32.totalorder %v39, %v144
  %v146 = vsel %vm145, 1, 0
  %v147 = vcvt.s32.f32 %v146
  %v148 = vadd.f32 %v141, %v147
  %149 = vset.pattern.permute.xlu0 2
  %150 = vperm.xlu0 %149, %v134
  %v151 = vpop.permute.xlu0 %150
  %vm152 = vcmp.eq.s32.totalorder %v39, %v151
  %v153 = vsel %vm152, 1, 0
  %v154 = vcvt.s32.f32 %v153
  %v155 = vadd.f32 %v148, %v154
  %156 = vset.pattern.permute.xlu0 3
  %157 = vperm.xlu0 %156, %v134
  %v158 = vpop.permute.xlu0 %157
  %vm159 = vcmp.eq.s32.totalorder %v39, %v158
  %v160 = vsel %vm159, 1, 0
  %v161 = vcvt.s32.f32 %v160
  %v162 = vadd.f32 %v155, %v161
  %163 = vset.pattern.permute.xlu0 4
  %164 = vperm.xlu0 %163, %v134
  %v165 = vpop.permute.xlu0 %164
  %vm166 = vcmp.eq.s32.totalorder %v39, %v165
  %v167 = vsel %vm166, 1, 0
  %v168 = vcvt.s32.f32 %v167
  %v169 = vadd.f32 %v162, %v168
  %170 = vset.pattern.permute.xlu0 5
  %171 = vperm.xlu0 %170, %v134
  %v172 = vpop.permute.xlu0 %171
  %vm173 = vcmp.eq.s32.totalorder %v39, %v172
  %v174 = vsel %vm173, 1, 0
  %v175 = vcvt.s32.f32 %v174
  %v176 = vadd.f32 %v169, %v175
  %177 = vset.pattern.permute.xlu0 6
  %178 = vperm.xlu0 %177, %v134
  %v179 = vpop.permute.xlu0 %178
  %vm180 = vcmp.eq.s32.totalorder %v39, %v179
  %v181 = vsel %vm180, 1, 0
  %v182 = vcvt.s32.f32 %v181
  %v183 = vadd.f32 %v176, %v182
  %184 = vset.pattern.permute.xlu0 7
  %185 = vperm.xlu0 %184, %v134
  %v186 = vpop.permute.xlu0 %185
  %vm187 = vcmp.eq.s32.totalorder %v39, %v186
  %v188 = vsel %vm187, 1, 0
  %v189 = vcvt.s32.f32 %v188
  %v190 = vadd.f32 %v183, %v189
  %v191 = vmul.f32 %v190, 0.125
  %192 = vmatpush.msra.mxu0 %v113
  %193 = vmatpush.msra.mxu0 %v112
  %194 = vmatpush.msra.mxu0 %v111
  %195 = vmatpush.msra.mxu0 %v110
  %196 = vmatpush.msra.mxu0 %v109
  %197 = vmatpush.msra.mxu0 %v108
  %198 = vmatpush.msra.mxu0 %v107
  %199 = vmatpush.msra.mxu0 %v106
  %200 = vmatpush.msra.mxu0 %v105
  %201 = vmatpush.msra.mxu0 %v104
  %202 = vmatpush.msra.mxu0 %v103
  %203 = vmatpush.msra.mxu0 %v102
  %204 = vmatpush.msra.mxu0 %v101
  %205 = vmatpush.msra.mxu0 %v100
  %206 = vmatpush.msra.mxu0 %v99
  %207 = vmatpush.msra.mxu0 %v98
  %208 = vmatmul.f32.gmra.mxu0 %v191
  %v209 = vpop.f32.mrf.mxu0
  %v210 = vadd.f32 0.0, %v209
  %211 = vdwg.mxu0
  %v212 = vld [vmem:[%s3] sm:$0xff]
  %v213 = vld [vmem:[%s3 + $0x8] sm:$0xff]
  %v214 = vld [vmem:[%s3 + $0x10] sm:$0xff]
  %v215 = vld [vmem:[%s3 + $0x18] sm:$0xff]
  %v216 = vld [vmem:[%s3 + $0x20] sm:$0xff]
  %v217 = vld [vmem:[%s3 + $0x28] sm:$0xff]
  %v218 = vld [vmem:[%s3 + $0x30] sm:$0xff]
  %v219 = vld [vmem:[%s3 + $0x38] sm:$0xff]
  %v220 = vld [vmem:[%s3 + $0x40] sm:$0xff]
  %v221 = vld [vmem:[%s3 + $0x48] sm:$0xff]
  %v222 = vld [vmem:[%s3 + $0x50] sm:$0xff]
  %v223 = vld [vmem:[%s3 + $0x58] sm:$0xff]
  %v224 = vld [vmem:[%s3 + $0x60] sm:$0xff]
  %v225 = vld [vmem:[%s3 + $0x68] sm:$0xff]
  %v226 = vld [vmem:[%s3 + $0x70] sm:$0xff]
  %v227 = vld [vmem:[%s3 + $0x78] sm:$0xff]
  %v228 = vld [vmem:[%s4] sm:$0xff]
  %v229 = vld [vmem:[%s4 + $0x8] sm:$0xff]
  %v230 = vld [vmem:[%s4 + $0x10] sm:$0xff]
  %v231 = vld [vmem:[%s4 + $0x18] sm:$0xff]
  %v232 = vld [vmem:[%s4 + $0x20] sm:$0xff]
  %v233 = vld [vmem:[%s4 + $0x28] sm:$0xff]
  %v234 = vld [vmem:[%s4 + $0x30] sm:$0xff]
  %v235 = vld [vmem:[%s4 + $0x38] sm:$0xff]
  %v236 = vld [vmem:[%s4 + $0x40] sm:$0xff]
  %v237 = vld [vmem:[%s4 + $0x48] sm:$0xff]
  %v238 = vld [vmem:[%s4 + $0x50] sm:$0xff]
  %v239 = vld [vmem:[%s4 + $0x58] sm:$0xff]
  %v240 = vld [vmem:[%s4 + $0x60] sm:$0xff]
  %v241 = vld [vmem:[%s4 + $0x68] sm:$0xff]
  %v242 = vld [vmem:[%s4 + $0x70] sm:$0xff]
  %v243 = vld [vmem:[%s4 + $0x78] sm:$0xff]
  %244 = vmatpush.msra.mxu0 %v243
  %245 = vmatpush.msra.mxu0 %v242
  %246 = vmatpush.msra.mxu0 %v241
  %247 = vmatpush.msra.mxu0 %v240
  %248 = vmatpush.msra.mxu0 %v239
  %249 = vmatpush.msra.mxu0 %v238
  %250 = vmatpush.msra.mxu0 %v237
  %251 = vmatpush.msra.mxu0 %v236
  %252 = vmatpush.msra.mxu0 %v235
  %253 = vmatpush.msra.mxu0 %v234
  %254 = vmatpush.msra.mxu0 %v233
  %255 = vmatpush.msra.mxu0 %v232
  %256 = vmatpush.msra.mxu0 %v231
  %257 = vmatpush.msra.mxu0 %v230
  %258 = vmatpush.msra.mxu0 %v229
  %259 = vmatpush.msra.mxu0 %v228
  %260 = vmatmul.f32.gmra.mxu0 %v210
  %v261 = vpop.f32.mrf.mxu0
  %v262 = vadd.f32 0.0, %v261
  %263 = vdwg.mxu0
  %264 = vmatpush.msra.mxu0 %v227
  %265 = vmatpush.msra.mxu0 %v226
  %266 = vmatpush.msra.mxu0 %v225
  %267 = vmatpush.msra.mxu0 %v224
  %268 = vmatpush.msra.mxu0 %v223
  %269 = vmatpush.msra.mxu0 %v222
  %270 = vmatpush.msra.mxu0 %v221
  %271 = vmatpush.msra.mxu0 %v220
  %272 = vmatpush.msra.mxu0 %v219
  %273 = vmatpush.msra.mxu0 %v218
  %274 = vmatpush.msra.mxu0 %v217
  %275 = vmatpush.msra.mxu0 %v216
  %276 = vmatpush.msra.mxu0 %v215
  %277 = vmatpush.msra.mxu0 %v214
  %278 = vmatpush.msra.mxu0 %v213
  %279 = vmatpush.msra.mxu0 %v212
  %280 = vmatmul.f32.gmra.mxu0 %v132
  %v281 = vpop.f32.mrf.mxu0
  %v282 = vadd.f32 %v262, %v281
  %283 = vdwg.mxu0
  %v284 = vmul.f32 %v132, %v210
  %v285 = vld [vmem:[%s5] sm:$0xff]
  %v286 = vld [vmem:[%s5 + $0x8] sm:$0xff]
  %v287 = vld [vmem:[%s5 + $0x10] sm:$0xff]
  %v288 = vld [vmem:[%s5 + $0x18] sm:$0xff]
  %v289 = vld [vmem:[%s5 + $0x20] sm:$0xff]
  %v290 = vld [vmem:[%s5 + $0x28] sm:$0xff]
  %v291 = vld [vmem:[%s5 + $0x30] sm:$0xff]
  %v292 = vld [vmem:[%s5 + $0x38] sm:$0xff]
  %v293 = vld [vmem:[%s5 + $0x40] sm:$0xff]
  %v294 = vld [vmem:[%s5 + $0x48] sm:$0xff]
  %v295 = vld [vmem:[%s5 + $0x50] sm:$0xff]
  %v296 = vld [vmem:[%s5 + $0x58] sm:$0xff]
  %v297 = vld [vmem:[%s5 + $0x60] sm:$0xff]
  %v298 = vld [vmem:[%s5 + $0x68] sm:$0xff]
  %v299 = vld [vmem:[%s5 + $0x70] sm:$0xff]
  %v300 = vld [vmem:[%s5 + $0x78] sm:$0xff]
  %301 = vmatpush.msra.mxu0 %v300
  %302 = vmatpush.msra.mxu0 %v299
  %303 = vmatpush.msra.mxu0 %v298
  %304 = vmatpush.msra.mxu0 %v297
  %305 = vmatpush.msra.mxu0 %v296
  %306 = vmatpush.msra.mxu0 %v295
  %307 = vmatpush.msra.mxu0 %v294
  %308 = vmatpush.msra.mxu0 %v293
  %309 = vmatpush.msra.mxu0 %v292
  %310 = vmatpush.msra.mxu0 %v291
  %311 = vmatpush.msra.mxu0 %v290
  %312 = vmatpush.msra.mxu0 %v289
  %313 = vmatpush.msra.mxu0 %v288
  %314 = vmatpush.msra.mxu0 %v287
  %315 = vmatpush.msra.mxu0 %v286
  %316 = vmatpush.msra.mxu0 %v285
  %317 = vmatmul.f32.gmra.mxu0 %v284
  %v318 = vpop.f32.mrf.mxu0
  %v319 = vadd.f32 0.0, %v318
  %320 = vdwg.mxu0
  %v321 = vadd.f32 %v282, %v319
  %v322 = vld [vmem:[%s6] sm:$0x1]
  %v324 = vperm.slane %v322, 0
  %v326 = vadd.f32 %v321, %v324
  %v327 = vld [vmem:[%s7] sm:$0xff]
  %v328 = vld [vmem:[%s7 + $0x8] sm:$0xff]
  %v329 = vld [vmem:[%s7 + $0x10] sm:$0xff]
  %v330 = vld [vmem:[%s7 + $0x18] sm:$0xff]
  %v331 = vld [vmem:[%s7 + $0x20] sm:$0xff]
  %v332 = vld [vmem:[%s7 + $0x28] sm:$0xff]
  %v333 = vld [vmem:[%s7 + $0x30] sm:$0xff]
  %v334 = vld [vmem:[%s7 + $0x38] sm:$0xff]
  %v335 = vld [vmem:[%s7 + $0x40] sm:$0xff]
  %v336 = vld [vmem:[%s7 + $0x48] sm:$0xff]
  %v337 = vld [vmem:[%s7 + $0x50] sm:$0xff]
  %v338 = vld [vmem:[%s7 + $0x58] sm:$0xff]
  %v339 = vld [vmem:[%s7 + $0x60] sm:$0xff]
  %v340 = vld [vmem:[%s7 + $0x68] sm:$0xff]
  %v341 = vld [vmem:[%s7 + $0x70] sm:$0xff]
  %v342 = vld [vmem:[%s7 + $0x78] sm:$0xff]
  %v343 = vld [vmem:[%s8] sm:$0x1]
  %v345 = vperm.slane %v343, 0
  %347 = vmatpush.msra.mxu0 %v342
  %348 = vmatpush.msra.mxu0 %v341
  %349 = vmatpush.msra.mxu0 %v340
  %350 = vmatpush.msra.mxu0 %v339
  %351 = vmatpush.msra.mxu0 %v338
  %352 = vmatpush.msra.mxu0 %v337
  %353 = vmatpush.msra.mxu0 %v336
  %354 = vmatpush.msra.mxu0 %v335
  %355 = vmatpush.msra.mxu0 %v334
  %356 = vmatpush.msra.mxu0 %v333
  %357 = vmatpush.msra.mxu0 %v332
  %358 = vmatpush.msra.mxu0 %v331
  %359 = vmatpush.msra.mxu0 %v330
  %360 = vmatpush.msra.mxu0 %v329
  %361 = vmatpush.msra.mxu0 %v328
  %362 = vmatpush.msra.mxu0 %v327
  %363 = vmatmul.f32.gmra.mxu0 %v326
  %v364 = vpop.f32.mrf.mxu0
  %v365 = vadd.f32 %v345, %v364
  %366 = vdwg.mxu0
  %v367 = vld [vmem:[%s9] sm:$0xff]
  %v368 = vld [vmem:[%s9 + $0x8] sm:$0xff]
  %v369 = vld [vmem:[%s9 + $0x10] sm:$0xff]
  %v370 = vld [vmem:[%s9 + $0x18] sm:$0xff]
  %v371 = vld [vmem:[%s9 + $0x20] sm:$0xff]
  %v372 = vld [vmem:[%s9 + $0x28] sm:$0xff]
  %v373 = vld [vmem:[%s9 + $0x30] sm:$0xff]
  %v374 = vld [vmem:[%s9 + $0x38] sm:$0xff]
  %v375 = vld [vmem:[%s9 + $0x40] sm:$0xff]
  %v376 = vld [vmem:[%s9 + $0x48] sm:$0xff]
  %v377 = vld [vmem:[%s9 + $0x50] sm:$0xff]
  %v378 = vld [vmem:[%s9 + $0x58] sm:$0xff]
  %v379 = vld [vmem:[%s9 + $0x60] sm:$0xff]
  %v380 = vld [vmem:[%s9 + $0x68] sm:$0xff]
  %v381 = vld [vmem:[%s9 + $0x70] sm:$0xff]
  %v382 = vld [vmem:[%s9 + $0x78] sm:$0xff]
  %v383 = vld [vmem:[%s10] sm:$0x1]
  %v385 = vperm.slane %v383, 0
  %387 = vmatpush.msra.mxu0 %v382
  %388 = vmatpush.msra.mxu0 %v381
  %389 = vmatpush.msra.mxu0 %v380
  %390 = vmatpush.msra.mxu0 %v379
  %391 = vmatpush.msra.mxu0 %v378
  %392 = vmatpush.msra.mxu0 %v377
  %393 = vmatpush.msra.mxu0 %v376
  %394 = vmatpush.msra.mxu0 %v375
  %395 = vmatpush.msra.mxu0 %v374
  %396 = vmatpush.msra.mxu0 %v373
  %397 = vmatpush.msra.mxu0 %v372
  %398 = vmatpush.msra.mxu0 %v371
  %399 = vmatpush.msra.mxu0 %v370
  %400 = vmatpush.msra.mxu0 %v369
  %401 = vmatpush.msra.mxu0 %v368
  %402 = vmatpush.msra.mxu0 %v367
  %403 = vmatmul.f32.gmra.mxu0 %v365
  %v404 = vpop.f32.mrf.mxu0
  %v405 = vadd.f32 %v385, %v404
  %406 = vdwg.mxu0
  %407 = vst [vmem:[%s11] sm:$0xff] %v405
  // Predicated region
  $region46: #{nli_model_forward.1} parent=0 // pred_check
    _
  $region47: #{nli_model_forward.1} parent=0 // pred_check_branch
    %409 = sbr.rel (0) target = $region49
  $region48: #{nli_model_forward.1} parent=0 // pred_region
    _
  $region49: #{nli_model_forward.1} parent=0 // pred_fallthru
    _
  // Predicated region
  $region50: #{nli_model_forward.1} parent=0 // pred_check
    _
  $region51: #{nli_model_forward.1} parent=0 // pred_check_branch
    %411 = sbr.rel (0) target = $region53
  $region52: #{nli_model_forward.1} parent=0 // pred_region
    _
  $region53: #{nli_model_forward.1} parent=0 // pred_fallthru
    _

</llo_original>
